<compile_context>
chip_gen: v5e
topology: v5e:2x2
jax: 0.10.0
libtpu: 0.0.40
codegen_flags: <defaults>
</compile_context>

<pallas_src>
import functools
import math

import jax
import jax.numpy as jnp
from jax.experimental import pallas as pl
from jax.experimental.pallas import tpu as pltpu


def _gather_mean_kernel(idx_ref, emb_ref, hid_ref, *, num_context, inv_count):
    """hidden = mean(emb[idx], axis=0), replicated to 8 sublanes, cast to bf16.

    idx_ref: SMEM (C,) int32 context indices (scalar-prefetched).
    emb_ref: VMEM (V, E) f32 embedding table (small; fully resident).
    hid_ref: VMEM (8, E) bf16 output (row-replicated hidden).
    """
    acc = emb_ref[pl.ds(idx_ref[0], 1), :].astype(jnp.float32)      # (1, E)
    for c in range(1, num_context):                                  # tiny static unroll
        acc = acc + emb_ref[pl.ds(idx_ref[c], 1), :].astype(jnp.float32)
    hidden = acc * inv_count                                         # (1, E) f32
    hid_ref[...] = jnp.broadcast_to(hidden, hid_ref.shape).astype(hid_ref.dtype)


def _linear_kernel(hid_ref, w_ref, b_ref, out_ref):
    """One vocab tile of output_layer: hidden @ W_t (+ bias).

    hid_ref: VMEM (8, E) bf16 (same block every tile -> stays resident).
    w_ref:   VMEM (E, v_tile) bf16 (pre-transposed, lane-dense).
    b_ref:   VMEM (1, v_tile) f32.
    out_ref: VMEM (1, v_tile) f32.
    """
    logits = jnp.dot(hid_ref[...], w_ref[...],
                     preferred_element_type=jnp.float32)             # (8, v_tile) f32
    out_ref[...] = logits[0:1, :] + b_ref[...]


def cbow_forward(context_idx, emb_weight, out_weight, out_bias, *, v_tile=512):
    """Forward pass of CBOWWithEmbedding.

    context_idx: (C,) int32 context-word indices (the module's input X).
    emb_weight:  (V, E) float32 nn.Embedding.weight.
    out_weight:  (V, E) float32 nn.Linear.weight (PyTorch (out, in) layout).
    out_bias:    (V,)  float32 nn.Linear.bias.
    Returns (1, V) float32 logits.
    """
    C = int(context_idx.shape[0])
    V, E = emb_weight.shape

    # Pad the vocab (lane) dimension to a multiple of v_tile for lane-dense
    # stores / DMAs; padding (zero W columns & bias) is sliced off afterwards.
    n_vt = pl.cdiv(V, v_tile)
    v_pad = n_vt * v_tile

    # Pre-transpose + pad W to (E, v_pad) bf16 (canonical K-sublane / N-lane);
    # the padded copy was already being materialized, so the transpose is free.
    w_t = jnp.zeros((E, v_pad), jnp.bfloat16).at[:, :V].set(
        out_weight.T.astype(jnp.bfloat16))
    b_p = jnp.zeros((1, v_pad), jnp.float32).at[0, :V].set(
        out_bias.astype(jnp.float32))

    # ---- Kernel 1 (runs once): gather + mean -> (8, E) bf16 hidden ----------
    hidden8 = pl.pallas_call(
        functools.partial(_gather_mean_kernel, num_context=C, inv_count=1.0 / C),
        out_shape=jax.ShapeDtypeStruct((8, E), jnp.bfloat16),
        grid_spec=pltpu.PrefetchScalarGridSpec(
            num_scalar_prefetch=1,                                   # indices -> SMEM
            grid=(1,),
            in_specs=[pl.BlockSpec((V, E), lambda i, idx: (0, 0))],  # whole table in VMEM
            out_specs=pl.BlockSpec((8, E), lambda i, idx: (0, 0)),
        ),
        compiler_params=pltpu.CompilerParams(
            dimension_semantics=("arbitrary",),
        ),
        cost_estimate=pl.CostEstimate(
            flops=C * E,
            transcendentals=0,
            bytes_accessed=V * E * 4 + 8 * E * 2 + C * 4,
        ),
    )(context_idx.astype(jnp.int32), emb_weight.astype(jnp.float32))

    # ---- Kernel 2: logits = hidden @ W_t + b, tiled over the vocab ----------
    out_padded = pl.pallas_call(
        _linear_kernel,
        out_shape=jax.ShapeDtypeStruct((1, v_pad), jnp.float32),
        grid_spec=pltpu.PrefetchScalarGridSpec(
            num_scalar_prefetch=0,
            grid=(n_vt,),
            in_specs=[
                pl.BlockSpec((8, E), lambda j: (0, 0)),        # hidden: resident, no re-DMA
                pl.BlockSpec((E, v_tile), lambda j: (0, j)),   # one vocab tile of W_t
                pl.BlockSpec((1, v_tile), lambda j: (0, j)),   # matching bias tile
            ],
            out_specs=pl.BlockSpec((1, v_tile), lambda j: (0, j)),
        ),
        compiler_params=pltpu.CompilerParams(
            dimension_semantics=("parallel",),                 # vocab tiles -> v7x megacore
            vmem_limit_bytes=32 * 1024 * 1024,                 # safe on v5e/v6e/v7x
        ),
        cost_estimate=pl.CostEstimate(
            flops=2 * E * v_pad,
            transcendentals=0,
            bytes_accessed=v_pad * E * 2 + 2 * v_pad * 4 + 8 * E * 2,
        ),
    )(hidden8, w_t, b_p)

    return out_padded[:, :V]


if __name__ == "__main__":
    # Vocabulary derived from the reference script's sentences.
    sentences = ['Kage is Teacher', 'Mazong is Boss', 'Niuzong is Boss',
                 'Xiaobing is Student', 'Xiaoxue is Student']
    words = ' '.join(sentences).split()
    word_list = sorted(set(words))   # sorted for determinism
    voc_size = len(word_list)        # 9
    embedding_size = 32
    num_context = 4                  # number of context words fed to forward()

    key = jax.random.PRNGKey(0)
    k_idx, k_emb, k_w, k_b = jax.random.split(key, 4)

    # Context-word indices (the module's input X).
    context_idx = jax.random.randint(k_idx, (num_context,), 0, voc_size,
                                     dtype=jnp.int32)

    # Parameter init mimicking PyTorch defaults:
    #   nn.Embedding.weight ~ N(0, 1); nn.Linear weight/bias ~ U(+-1/sqrt(fan_in)).
    emb_weight = jax.random.normal(k_emb, (voc_size, embedding_size), jnp.float32)
    bound = 1.0 / math.sqrt(embedding_size)
    out_weight = jax.random.uniform(k_w, (voc_size, embedding_size),
                                    jnp.float32, -bound, bound)
    out_bias = jax.random.uniform(k_b, (voc_size,), jnp.float32, -bound, bound)

    out = cbow_forward(context_idx, emb_weight, out_weight, out_bias)
    out = jax.block_until_ready(out)

    # Pure-JAX f32 reference of the PyTorch semantics.
    hidden_ref = emb_weight[context_idx].mean(axis=0, keepdims=True)
    ref = hidden_ref @ out_weight.T + out_bias[None, :]

    assert out.shape == (1, voc_size)
    # bf16 operands (f32 accumulation) vs f32 reference -> loose tolerance.
    assert jnp.allclose(out, ref, atol=5e-2, rtol=5e-2), "mismatch vs reference"

    print("KERNEL_OK")
</pallas_src>

<mosaic_0001>
module attributes {stable_mosaic.version = 11 : i64} {
  func.func @_gather_mean_kernel(%arg0: i32, %arg1: memref<4xi32, #tpu.memory_space<smem>>, %arg2: memref<9x32xf32, #tpu.memory_space<vmem>>, %arg3: memref<8x32xbf16, #tpu.memory_space<vmem>>) attributes {dimension_semantics = [#tpu.dimension_semantics<arbitrary>], iteration_bounds = array<i64: 1>, scalar_prefetch = 1 : i64, scratch_operands = 0 : i64, tpu.core_type = #tpu.core_type<tc>, window_params = [{pipeline_mode = #tpu.pipeline_mode<synchronous>, transform_indices = @transform_0, window_bounds = array<i64: 9, 32>}, {pipeline_mode = #tpu.pipeline_mode<synchronous>, transform_indices = @transform_1, window_bounds = array<i64: 8, 32>}]} {
    %c0 = arith.constant 0 : index
    %0 = memref.load %arg1[%c0] : memref<4xi32, #tpu.memory_space<smem>>
    %1 = arith.index_cast %0 : i32 to index
    %c0_0 = arith.constant 0 : index
    %2 = vector.load %arg2[%1, %c0_0] : memref<9x32xf32, #tpu.memory_space<vmem>>, vector<1x32xf32>
    %c1 = arith.constant 1 : index
    %3 = memref.load %arg1[%c1] : memref<4xi32, #tpu.memory_space<smem>>
    %4 = arith.index_cast %3 : i32 to index
    %c0_1 = arith.constant 0 : index
    %5 = vector.load %arg2[%4, %c0_1] : memref<9x32xf32, #tpu.memory_space<vmem>>, vector<1x32xf32>
    %6 = arith.addf %2, %5 : vector<1x32xf32>
    %c2 = arith.constant 2 : index
    %7 = memref.load %arg1[%c2] : memref<4xi32, #tpu.memory_space<smem>>
    %8 = arith.index_cast %7 : i32 to index
    %c0_2 = arith.constant 0 : index
    %9 = vector.load %arg2[%8, %c0_2] : memref<9x32xf32, #tpu.memory_space<vmem>>, vector<1x32xf32>
    %10 = arith.addf %6, %9 : vector<1x32xf32>
    %c3 = arith.constant 3 : index
    %11 = memref.load %arg1[%c3] : memref<4xi32, #tpu.memory_space<smem>>
    %12 = arith.index_cast %11 : i32 to index
    %c0_3 = arith.constant 0 : index
    %13 = vector.load %arg2[%12, %c0_3] : memref<9x32xf32, #tpu.memory_space<vmem>>, vector<1x32xf32>
    %14 = arith.addf %10, %13 : vector<1x32xf32>
    %cst = arith.constant 2.500000e-01 : f32
    %15 = vector.broadcast %cst : f32 to vector<1x32xf32>
    %16 = arith.mulf %14, %15 : vector<1x32xf32>
    %17 = vector.shape_cast %16 : vector<1x32xf32> to vector<1x32xf32>
    %18 = vector.broadcast %17 : vector<1x32xf32> to vector<8x32xf32>
    %19 = arith.truncf %18 : vector<8x32xf32> to vector<8x32xbf16>
    %c0_4 = arith.constant 0 : index
    %c0_5 = arith.constant 0 : index
    %20 = vector.load %arg3[%c0_4, %c0_5] : memref<8x32xbf16, #tpu.memory_space<vmem>>, vector<8x32xbf16>
    tpu.vector_store %arg3[%c0_4, %c0_5], %19 {strides = array<i32>} : memref<8x32xbf16, #tpu.memory_space<vmem>>, vector<8x32xbf16>,
    return
  }
  func.func @transform_0(%arg0: i32, %arg1: memref<4xi32, #tpu.memory_space<smem>>) -> (i32, i32) {
    %c0_i32 = arith.constant 0 : i32
    %c0_i32_0 = arith.constant 0 : i32
    %c0_i32_1 = arith.constant 0 : i32
    return %c0_i32, %c0_i32_0 : i32, i32
  }
  func.func @transform_1(%arg0: i32, %arg1: memref<4xi32, #tpu.memory_space<smem>>) -> (i32, i32) {
    %c0_i32 = arith.constant 0 : i32
    %c0_i32_0 = arith.constant 0 : i32
    %c0_i32_1 = arith.constant 0 : i32
    return %c0_i32, %c0_i32_0 : i32, i32
  }
}

</mosaic_0001>

<llo_original>
// kernel: tpu_custom_call.1
$region0: #{tpu_custom_call.1}
  #allocation0 [shape = 'u32[]', space=smem, size = 0x4, offset = 0x4, fixed_abs, tag = 'smem constant byte address 0x4 - core index']
  #allocation1 [shape = 'u32[72,128]{1,0:T(1,128)}', space=vmem, size = 0x9000, scoped, tag = 'internal scratch']
  #allocation2 [shape = 's32[1]{0}', space=sflag, size = 0x4, scoped, tag = 'scoped memory for tpu_custom_call.1']
  #allocation3 [shape = 'u8[512]{0}', space=smem, size = 0x200, scoped, tag = 'prefetched SMEM operand 0']
  %s0 = inlined_call_operand.hbm [shape: s32[4], index: 0, kind: input, shape index: {}]
  %s1 = inlined_call_operand.hbm [shape: f32[9,32], index: 1, kind: input, shape index: {}]
  %s2 = inlined_call_operand.hbm [shape: bf16[8,32], index: 2, kind: output, shape index: {}]
  %s3 = sld [smem:[#allocation0]]
  $region18: #{tpu_custom_call.1} parent=0
    _
  %s5 = ssub.s32 1, %s3
  %s6 = scalar_select 0, %s5, %s3
  %s8 = sshll.u32 %s0, 4
  %s9 = int_to_ptr.hbm [resolvable:$true] %s8
  %11 = dma.hbm_to_smem %s9, 16, [#allocation3], [#allocation2]
  %13 = dma.done [#allocation2], 16
  %14 = sfence
  $region1: #{tpu_custom_call.1} parent=0
    #allocation4 [shape = 'u8[8192]{0}', space=vmem, size = 0x2000, scoped, tag = 'input window, operand 1, single buffered']
    #allocation5 [shape = 's32[1]{0}', space=sflag, size = 0x4, scoped, tag = 'scoped memory for tpu_custom_call.1']
    #allocation6 [shape = 's32[1]{0}', space=sflag, size = 0x4, scoped, tag = 'scoped memory for tpu_custom_call.1']
    #allocation7 [shape = 'u8[2048]{0}', space=vmem, size = 0x800, scoped, tag = 'output window, operand 0, single buffered']
    %15 = vsyncpa [#allocation5], 0
    %16 = vsyncpa [#allocation6], 0
    // Predicated region
    $region2: #{tpu_custom_call.1} parent=1 // pred_check
      _
    $region3: #{tpu_custom_call.1} parent=1 // pred_check_branch
      %18 = sbr.rel (0) target = $region5
    $region4: #{tpu_custom_call.1} parent=1 // pred_region
      %20 = vsyncadd [#allocation5], 0
      %s21 = sshll.u32 %s1, 4
      %s22 = int_to_ptr.hbm [resolvable:$true] %s21
      %s23 = sshll.u32 [#allocation4], 4
      %s24 = int_to_ptr.vmem [resolvable:$true] %s23
      %29 = dma.hbm_to_vmem [thread:$0]  %s22, 256, %s24, [#allocation5], 128, 128, 8
    $region5: #{tpu_custom_call.1} parent=1 // pred_fallthru
      _
    // Predicated region
    $region6: #{tpu_custom_call.1} parent=1 // pred_check
      _
    $region7: #{tpu_custom_call.1} parent=1 // pred_check_branch
      %31 = sbr.rel (0) target = $region9
    $region8: #{tpu_custom_call.1} parent=1 // pred_region
      %33 = dma.done [#allocation5], 256
    $region9: #{tpu_custom_call.1} parent=1 // pred_fallthru
      _
    %s34 = sld [smem:[#allocation3]]
    %s35 = scalar_lea.vmem [#allocation4], %s34
    %v36 = vld [vmem:[%s35] sm:$0x1]
    %s37 = sld [smem:[#allocation3 + $0x1]]
    %s38 = scalar_lea.vmem [#allocation4], %s37
    %v39 = vld [vmem:[%s38] sm:$0x1]
    %v40 = vadd.f32 %v36, %v39
    %s41 = sld [smem:[#allocation3 + $0x2]]
    %s42 = scalar_lea.vmem [#allocation4], %s41
    %v43 = vld [vmem:[%s42] sm:$0x1]
    %v44 = vadd.f32 %v40, %v43
    %s45 = sld [smem:[#allocation3 + $0x3]]
    %s46 = scalar_lea.vmem [#allocation4], %s45
    %v47 = vld [vmem:[%s46] sm:$0x1]
    %v48 = vadd.f32 %v44, %v47
    %v49 = vmul.f32 %v48, 0.25
    %v50 = vperm.slane %v49, 0
    %v51 = vpack.c.bf16 %v50, %v50
    %vm52 = vcmask 257024
    %53 = vst.msk [vmem:[#allocation7] sm:$0xf] %vm52, %v51
    // Predicated region
    $region10: #{tpu_custom_call.1} parent=1 // pred_check
      _
    $region11: #{tpu_custom_call.1} parent=1 // pred_check_branch
      %55 = sbr.rel (0) target = $region13
    $region12: #{tpu_custom_call.1} parent=1 // pred_region
      %57 = vsyncadd [#allocation6], 0
      %s59 = sshll.u32 [#allocation7], 4
      %s60 = int_to_ptr.vmem [resolvable:$true] %s59
      %s61 = sshll.u32 %s2, 4
      %s62 = int_to_ptr.hbm [resolvable:$true] %s61
      %64 = dma.vmem_to_hbm [thread:$0]  %s60, 64, %s62, [#allocation6]
    $region13: #{tpu_custom_call.1} parent=1 // pred_fallthru
      _
    // Predicated region
    $region14: #{tpu_custom_call.1} parent=1 // pred_check
      _
    $region15: #{tpu_custom_call.1} parent=1 // pred_check_branch
      %66 = sbr.rel (0) target = $region17
    $region16: #{tpu_custom_call.1} parent=1 // pred_region
      %68 = dma.done [#allocation6], 64
    $region17: #{tpu_custom_call.1} parent=1 // pred_fallthru
      _
    %69 = vsyncpa [#allocation5], 1
    %70 = vsyncpa [#allocation6], 1

</llo_original>
